<compile_context>
chip_gen: v5e
topology: v5e:2x2
jax: 0.10.0
libtpu: 0.0.40
codegen_flags: <defaults>
</compile_context>

<pallas_src>
import math
import numpy as np
import jax
import jax.numpy as jnp
from jax.experimental import pallas as pl
from jax.experimental.pallas import tpu as pltpu

K = 7            # Conv1d kernel size
PAD = 3          # Conv1d padding
LN_EPS = 1e-5    # PyTorch LayerNorm default eps
INV_SQRT2 = 0.7071067811865476


def double_conv_kernel(xf_ref, w1_ref, b1_ref, g_ref, beta_ref,
                       w2_ref, b2_ref, mask_ref, seg_ref, segT_ref,
                       o_ref, hf_ref):
    # xf_ref  : (1, C_in, Ew)  pre-folded, zero-bordered input slab (Ew = Fw + 2*PAD)
    # w1_ref  : (MID, K*C_in)  conv1 weights, taps fused into the contraction dim
    # b1_ref  : (MID, 1)
    # g_ref   : (MID, Fw)      LayerNorm gamma tiled into the lane-dense fold
    # beta_ref: (MID, Fw)      LayerNorm beta  tiled into the lane-dense fold
    # w2_ref  : (C_out, K*MID)
    # b2_ref  : (C_out, 1)
    # mask_ref: (K, Fw)        per-tap conv boundary masks (kill cross-sample taps)
    # seg_ref : (Fw, NB)       lane-dense column -> sample indicator (segment sum)
    # segT_ref: (NB, Fw)       per-sample -> per-column broadcast
    # o_ref   : (1, C_out, Fw) lane-dense output slab (Fw = NB*L)
    # hf_ref  : (MID, Ew)      VMEM scratch: zero-bordered slab for conv2
    mid = w1_ref.shape[0]
    Fw, NB = seg_ref.shape
    L = Fw // NB
    inv_count = 1.0 / float(mid * L)

    def im2col(get_slice):
        cols = []
        for k in range(K):                 # static, K = 7
            sl = get_slice(k)
            if k != PAD:                   # center tap never crosses a boundary
                sl = sl * mask_ref[k:k + 1, :]
            cols.append(sl)
        return jnp.concatenate(cols, axis=0)

    # --- Conv1d #1: single fused matmul over the masked im2col stack ----------
    x_slab = xf_ref[0].astype(jnp.float32)                       # (C_in, Ew)
    stack1 = im2col(lambda k: x_slab[:, k:k + Fw])               # (K*C_in, Fw)
    h = jnp.dot(w1_ref[...], stack1,
                preferred_element_type=jnp.float32) + b1_ref[...]  # (mid, Fw)

    # --- LayerNorm over (mid, L) per sample: one-pass stats, fused matmuls ----
    colsum = jnp.sum(h, axis=0, keepdims=True)                   # (1, Fw)
    colsq = jnp.sum(h * h, axis=0, keepdims=True)                # (1, Fw)
    stats = jnp.concatenate([colsum, colsq], axis=0)             # (2, Fw)
    s = jnp.dot(stats, seg_ref[...], preferred_element_type=jnp.float32)  # (2, NB)
    mean = s[0:1] * inv_count
    ex2 = s[1:2] * inv_count
    var = jnp.maximum(ex2 - mean * mean, 0.0)
    inv_std = jax.lax.rsqrt(var + LN_EPS)
    mb = jnp.dot(jnp.concatenate([mean, inv_std], axis=0), segT_ref[...],
                 preferred_element_type=jnp.float32)             # (2, Fw)
    hn = (h - mb[0:1]) * mb[1:2] * g_ref[...] + beta_ref[...]    # (mid, Fw)

    # --- Conv1d #2: write interior of the zero-bordered scratch slab; only the
    #     2*PAD border lanes are zeroed each step (no full-slab rezero) --------
    hf_ref[:, 0:PAD] = jnp.zeros((mid, PAD), jnp.float32)
    hf_ref[:, PAD + Fw:PAD + Fw + PAD] = jnp.zeros((mid, PAD), jnp.float32)
    hf_ref[:, PAD:PAD + Fw] = hn
    stack2 = im2col(lambda k: hf_ref[:, k:k + Fw])               # (K*mid, Fw)
    y = jnp.dot(w2_ref[...], stack2,
                preferred_element_type=jnp.float32) + b2_ref[...]  # (C_out, Fw)

    # --- exact GELU, lane-dense store ------------------------------------------
    o_ref[0] = (0.5 * y * (1.0 + jax.lax.erf(y * INV_SQRT2))).astype(o_ref.dtype)


def _ceil_div(a, b):
    return -(-a // b)


def _round_up(a, b):
    return _ceil_div(a, b) * b


def double_conv(x, w1, b1, ln_gamma, ln_beta, w2, b2, *, block_batch=None):
    """x: (N, C_in, L) float32. Weights in PyTorch layout:
       w1: (MID, C_in, K), b1: (MID,), ln_*: (MID, L), w2: (C_out, MID, K), b2: (C_out,)."""
    N, c_in, L = x.shape
    mid = w1.shape[0]
    c_out = w2.shape[0]

    # Samples per grid step: lane-dense fold targets ~2048 lanes/step and keeps
    # NB*L a multiple of 128 (unmasked full-lane output stores) when possible.
    if block_batch is None:
        lane_mult = 128 // math.gcd(128, L)
        nb = max(lane_mult, _round_up(_ceil_div(2048, L), lane_mult))
        block_batch = min(nb, _round_up(N, lane_mult))
    NB = block_batch
    num_blocks = _ceil_div(N, NB)
    Npad = num_blocks * NB
    Fw = NB * L            # lane-dense folded width per step
    Ew = Fw + 2 * PAD      # extended slab width (zero borders for conv shifts)

    if Npad != N:
        x = jnp.pad(x, ((0, Npad - N), (0, 0), (0, 0)))

    # Fold the batch into lanes in the WRAPPER (one XLA transpose + pad), so the
    # kernel does no per-step scatter stores for input layout.
    xf = x.reshape(num_blocks, NB, c_in, L).transpose(0, 2, 1, 3)
    xf = xf.reshape(num_blocks, c_in, Fw)
    xf = jnp.pad(xf, ((0, 0), (0, 0), (PAD, PAD))).astype(jnp.float32)

    # ---- static host-side layout constants (tiny, shape-dependent) ------------
    q = np.arange(Fw)
    seg_np = (q[:, None] // L == np.arange(NB)[None, :]).astype(np.float32)  # (Fw, NB)
    src = (q % L)[None, :] + np.arange(K)[:, None] - PAD
    mask_np = ((src >= 0) & (src < L)).astype(np.float32)                    # (K, Fw)

    seg = jnp.asarray(seg_np)
    segT = jnp.asarray(np.ascontiguousarray(seg_np.T))
    tapmask = jnp.asarray(mask_np)

    # Fuse conv taps into the contraction dim: W[m, k*C_in + c] = w[m, c, k]
    w1_2d = jnp.transpose(w1, (0, 2, 1)).reshape(mid, K * c_in).astype(jnp.float32)
    w2_2d = jnp.transpose(w2, (0, 2, 1)).reshape(c_out, K * mid).astype(jnp.float32)
    b1_c = b1.reshape(mid, 1).astype(jnp.float32)
    b2_c = b2.reshape(c_out, 1).astype(jnp.float32)

    # LayerNorm affine params tiled into the lane-dense fold (no pad lanes now)
    g_f = jnp.tile(ln_gamma.astype(jnp.float32), (1, NB))       # (mid, Fw)
    be_f = jnp.tile(ln_beta.astype(jnp.float32), (1, NB))       # (mid, Fw)

    out = pl.pallas_call(
        double_conv_kernel,
        out_shape=jax.ShapeDtypeStruct((num_blocks, c_out, Fw), x.dtype),
        grid_spec=pltpu.PrefetchScalarGridSpec(
            num_scalar_prefetch=0,
            grid=(num_blocks,),
            in_specs=[
                pl.BlockSpec((1, c_in, Ew), lambda b: (b, 0, 0)),
                pl.BlockSpec((mid, K * c_in), lambda b: (0, 0)),
                pl.BlockSpec((mid, 1), lambda b: (0, 0)),
                pl.BlockSpec((mid, Fw), lambda b: (0, 0)),
                pl.BlockSpec((mid, Fw), lambda b: (0, 0)),
                pl.BlockSpec((c_out, K * mid), lambda b: (0, 0)),
                pl.BlockSpec((c_out, 1), lambda b: (0, 0)),
                pl.BlockSpec((K, Fw), lambda b: (0, 0)),
                pl.BlockSpec((Fw, NB), lambda b: (0, 0)),
                pl.BlockSpec((NB, Fw), lambda b: (0, 0)),
            ],
            out_specs=pl.BlockSpec((1, c_out, Fw), lambda b: (b, 0, 0)),
            scratch_shapes=[pltpu.VMEM((mid, Ew), jnp.float32)],
        ),
        compiler_params=pltpu.CompilerParams(
            dimension_semantics=("parallel",),
            vmem_limit_bytes=48 * 1024 * 1024),
    )(xf, w1_2d, b1_c, g_f, be_f, w2_2d, b2_c, tapmask, seg, segT)

    # (num_blocks, C_out, NB*L) -> (N, C_out, L): pure layout plumbing in XLA
    out = out.reshape(num_blocks, c_out, NB, L)
    out = jnp.transpose(out, (0, 2, 1, 3)).reshape(Npad, c_out, L)
    return out[:N]


def double_conv_ref(x, w1, b1, g, be, w2, b2):
    """Pure-JAX reference matching the PyTorch module."""
    h = jax.lax.conv_general_dilated(
        x, w1, window_strides=(1,), padding=[(PAD, PAD)],
        dimension_numbers=("NCH", "OIH", "NCH")) + b1[None, :, None]
    mu = jnp.mean(h, axis=(1, 2), keepdims=True)
    var = jnp.mean((h - mu) ** 2, axis=(1, 2), keepdims=True)
    hn = (h - mu) * jax.lax.rsqrt(var + LN_EPS) * g[None] + be[None]
    y = jax.lax.conv_general_dilated(
        hn, w2, window_strides=(1,), padding=[(PAD, PAD)],
        dimension_numbers=("NCH", "OIH", "NCH")) + b2[None, :, None]
    return 0.5 * y * (1.0 + jax.lax.erf(y * INV_SQRT2))


if __name__ == "__main__":
    # Small DoubleConv-consistent shapes:
    # in_channels=4, out_channels=8 (mid defaults to out), seq_length=16, batch=2.
    N, C_IN, MID, C_OUT, L = 2, 4, 8, 8, 16

    key = jax.random.PRNGKey(0)
    k_x, k_w1, k_b1, k_w2, k_b2 = jax.random.split(key, 5)

    x = jax.random.normal(k_x, (N, C_IN, L), dtype=jnp.float32)
    w1 = 0.1 * jax.random.normal(k_w1, (MID, C_IN, K), dtype=jnp.float32)
    b1 = 0.1 * jax.random.normal(k_b1, (MID,), dtype=jnp.float32)
    ln_gamma = jnp.ones((MID, L), dtype=jnp.float32)
    ln_beta = jnp.zeros((MID, L), dtype=jnp.float32)
    w2 = 0.1 * jax.random.normal(k_w2, (C_OUT, MID, K), dtype=jnp.float32)
    b2 = 0.1 * jax.random.normal(k_b2, (C_OUT,), dtype=jnp.float32)

    out = double_conv(x, w1, b1, ln_gamma, ln_beta, w2, b2)
    jax.block_until_ready(out)

    ref = double_conv_ref(x, w1, b1, ln_gamma, ln_beta, w2, b2)
    jax.block_until_ready(ref)
    assert out.shape == ref.shape
    assert bool(jnp.allclose(out, ref, atol=2e-2, rtol=2e-2)), "mismatch vs reference"

    print("KERNEL_OK")
</pallas_src>

<mosaic_0001>
module attributes {stable_mosaic.version = 11 : i64} {
  func.func @double_conv_kernel(%arg0: i32, %arg1: memref<1x4x134xf32, #tpu.memory_space<vmem>>, %arg2: memref<8x28xf32, #tpu.memory_space<vmem>>, %arg3: memref<8x1xf32, #tpu.memory_space<vmem>>, %arg4: memref<8x128xf32, #tpu.memory_space<vmem>>, %arg5: memref<8x128xf32, #tpu.memory_space<vmem>>, %arg6: memref<8x56xf32, #tpu.memory_space<vmem>>, %arg7: memref<8x1xf32, #tpu.memory_space<vmem>>, %arg8: memref<7x128xf32, #tpu.memory_space<vmem>>, %arg9: memref<128x8xf32, #tpu.memory_space<vmem>>, %arg10: memref<8x128xf32, #tpu.memory_space<vmem>>, %arg11: memref<1x8x128xf32, #tpu.memory_space<vmem>>, %arg12: memref<8x134xf32, #tpu.memory_space<vmem>>) attributes {dimension_semantics = [#tpu.dimension_semantics<parallel>], iteration_bounds = array<i64: 1>, scalar_prefetch = 0 : i64, scratch_operands = 1 : i64, tpu.core_type = #tpu.core_type<tc>, window_params = [{transform_indices = @transform_0, window_bounds = array<i64: 1, 4, 134>}, {pipeline_mode = #tpu.pipeline_mode<synchronous>, transform_indices = @transform_1, window_bounds = array<i64: 8, 28>}, {pipeline_mode = #tpu.pipeline_mode<synchronous>, transform_indices = @transform_2, window_bounds = array<i64: 8, 1>}, {pipeline_mode = #tpu.pipeline_mode<synchronous>, transform_indices = @transform_3, window_bounds = array<i64: 8, 128>}, {pipeline_mode = #tpu.pipeline_mode<synchronous>, transform_indices = @transform_4, window_bounds = array<i64: 8, 128>}, {pipeline_mode = #tpu.pipeline_mode<synchronous>, transform_indices = @transform_5, window_bounds = array<i64: 8, 56>}, {pipeline_mode = #tpu.pipeline_mode<synchronous>, transform_indices = @transform_6, window_bounds = array<i64: 8, 1>}, {pipeline_mode = #tpu.pipeline_mode<synchronous>, transform_indices = @transform_7, window_bounds = array<i64: 7, 128>}, {pipeline_mode = #tpu.pipeline_mode<synchronous>, transform_indices = @transform_8, window_bounds = array<i64: 128, 8>}, {pipeline_mode = #tpu.pipeline_mode<synchronous>, transform_indices = @transform_9, window_bounds = array<i64: 8, 128>}, {transform_indices = @transform_10, window_bounds = array<i64: 1, 8, 128>}]} {
    %c0 = arith.constant 0 : index
    %c0_0 = arith.constant 0 : index
    %c0_1 = arith.constant 0 : index
    %0 = vector.load %arg1[%c0, %c0_0, %c0_1] : memref<1x4x134xf32, #tpu.memory_space<vmem>>, vector<1x4x134xf32>
    %1 = vector.shape_cast %0 : vector<1x4x134xf32> to vector<4x134xf32>
    %2 = vector.extract_strided_slice %1 {offsets = [0, 0], sizes = [4, 128], strides = [1, 1]} : vector<4x134xf32> to vector<4x128xf32>
    %c0_2 = arith.constant 0 : index
    %c0_3 = arith.constant 0 : index
    %3 = vector.load %arg8[%c0_2, %c0_3] : memref<7x128xf32, #tpu.memory_space<vmem>>, vector<1x128xf32>
    %4 = vector.broadcast %3 : vector<1x128xf32> to vector<4x128xf32>
    %5 = arith.mulf %2, %4 : vector<4x128xf32>
    %6 = vector.extract_strided_slice %1 {offsets = [0, 1], sizes = [4, 128], strides = [1, 1]} : vector<4x134xf32> to vector<4x128xf32>
    %c1 = arith.constant 1 : index
    %c0_4 = arith.constant 0 : index
    %7 = vector.load %arg8[%c1, %c0_4] : memref<7x128xf32, #tpu.memory_space<vmem>>, vector<1x128xf32>
    %8 = vector.broadcast %7 : vector<1x128xf32> to vector<4x128xf32>
    %9 = arith.mulf %6, %8 : vector<4x128xf32>
    %10 = vector.extract_strided_slice %1 {offsets = [0, 2], sizes = [4, 128], strides = [1, 1]} : vector<4x134xf32> to vector<4x128xf32>
    %c2 = arith.constant 2 : index
    %c0_5 = arith.constant 0 : index
    %11 = vector.load %arg8[%c2, %c0_5] : memref<7x128xf32, #tpu.memory_space<vmem>>, vector<1x128xf32>
    %12 = vector.broadcast %11 : vector<1x128xf32> to vector<4x128xf32>
    %13 = arith.mulf %10, %12 : vector<4x128xf32>
    %14 = vector.extract_strided_slice %1 {offsets = [0, 3], sizes = [4, 128], strides = [1, 1]} : vector<4x134xf32> to vector<4x128xf32>
    %15 = vector.extract_strided_slice %1 {offsets = [0, 4], sizes = [4, 128], strides = [1, 1]} : vector<4x134xf32> to vector<4x128xf32>
    %c4 = arith.constant 4 : index
    %c0_6 = arith.constant 0 : index
    %16 = vector.load %arg8[%c4, %c0_6] : memref<7x128xf32, #tpu.memory_space<vmem>>, vector<1x128xf32>
    %17 = vector.broadcast %16 : vector<1x128xf32> to vector<4x128xf32>
    %18 = arith.mulf %15, %17 : vector<4x128xf32>
    %19 = vector.extract_strided_slice %1 {offsets = [0, 5], sizes = [4, 128], strides = [1, 1]} : vector<4x134xf32> to vector<4x128xf32>
    %c5 = arith.constant 5 : index
    %c0_7 = arith.constant 0 : index
    %20 = vector.load %arg8[%c5, %c0_7] : memref<7x128xf32, #tpu.memory_space<vmem>>, vector<1x128xf32>
    %21 = vector.broadcast %20 : vector<1x128xf32> to vector<4x128xf32>
    %22 = arith.mulf %19, %21 : vector<4x128xf32>
    %23 = vector.extract_strided_slice %1 {offsets = [0, 6], sizes = [4, 128], strides = [1, 1]} : vector<4x134xf32> to vector<4x128xf32>
    %c6 = arith.constant 6 : index
    %c0_8 = arith.constant 0 : index
    %24 = vector.load %arg8[%c6, %c0_8] : memref<7x128xf32, #tpu.memory_space<vmem>>, vector<1x128xf32>
    %25 = vector.broadcast %24 : vector<1x128xf32> to vector<4x128xf32>
    %26 = arith.mulf %23, %25 : vector<4x128xf32>
    %27 = tpu.concatenate %5, %9, %13, %14, %18, %22, %26 in 0 : vector<4x128xf32>, vector<4x128xf32>, vector<4x128xf32>, vector<4x128xf32>, vector<4x128xf32>, vector<4x128xf32>, vector<4x128xf32> -> vector<28x128xf32>
    %c0_9 = arith.constant 0 : index
    %c0_10 = arith.constant 0 : index
    %28 = vector.load %arg2[%c0_9, %c0_10] : memref<8x28xf32, #tpu.memory_space<vmem>>, vector<8x28xf32>
    %cst = arith.constant dense<0.000000e+00> : vector<8x128xf32>
    %29 = tpu.matmul %28, %27, %cst {dimension_numbers = #tpu.dot_dimension_numbers<[1], [0], [0], [1], [0, 0, 1, 1], [], []>} : vector<8x28xf32>, vector<28x128xf32>, vector<8x128xf32> -> vector<8x128xf32>
    %c0_11 = arith.constant 0 : index
    %c0_12 = arith.constant 0 : index
    %30 = vector.load %arg3[%c0_11, %c0_12] : memref<8x1xf32, #tpu.memory_space<vmem>>, vector<8x1xf32>
    %31 = vector.broadcast %30 : vector<8x1xf32> to vector<8x128xf32>
    %32 = arith.addf %29, %31 : vector<8x128xf32>
    %cst_13 = arith.constant dense<0.000000e+00> : vector<128xf32>
    %33 = vector.multi_reduction <add>, %32, %cst_13 [0] : vector<8x128xf32> to vector<128xf32>
    %34 = vector.shape_cast %33 : vector<128xf32> to vector<1x128xf32>
    %35 = arith.mulf %32, %32 : vector<8x128xf32>
    %cst_14 = arith.constant dense<0.000000e+00> : vector<128xf32>
    %36 = vector.multi_reduction <add>, %35, %cst_14 [0] : vector<8x128xf32> to vector<128xf32>
    %37 = vector.shape_cast %36 : vector<128xf32> to vector<1x128xf32>
    %38 = tpu.concatenate %34, %37 in 0 : vector<1x128xf32>, vector<1x128xf32> -> vector<2x128xf32>
    %c0_15 = arith.constant 0 : index
    %c0_16 = arith.constant 0 : index
    %39 = vector.load %arg9[%c0_15, %c0_16] : memref<128x8xf32, #tpu.memory_space<vmem>>, vector<128x8xf32>
    %cst_17 = arith.constant dense<0.000000e+00> : vector<2x8xf32>
    %40 = tpu.matmul %38, %39, %cst_17 {dimension_numbers = #tpu.dot_dimension_numbers<[1], [0], [0], [1], [0, 0, 1, 1], [], []>} : vector<2x128xf32>, vector<128x8xf32>, vector<2x8xf32> -> vector<2x8xf32>
    %41 = vector.extract_strided_slice %40 {offsets = [0, 0], sizes = [1, 8], strides = [1, 1]} : vector<2x8xf32> to vector<1x8xf32>
    %cst_18 = arith.constant 7.812500e-03 : f32
    %42 = vector.broadcast %cst_18 : f32 to vector<1x8xf32>
    %43 = arith.mulf %41, %42 : vector<1x8xf32>
    %44 = vector.extract_strided_slice %40 {offsets = [1, 0], sizes = [1, 8], strides = [1, 1]} : vector<2x8xf32> to vector<1x8xf32>
    %cst_19 = arith.constant 7.812500e-03 : f32
    %45 = vector.broadcast %cst_19 : f32 to vector<1x8xf32>
    %46 = arith.mulf %44, %45 : vector<1x8xf32>
    %47 = arith.mulf %43, %43 : vector<1x8xf32>
    %48 = arith.subf %46, %47 : vector<1x8xf32>
    %cst_20 = arith.constant 0.000000e+00 : f32
    %49 = vector.broadcast %cst_20 : f32 to vector<1x8xf32>
    %50 = arith.maximumf %48, %49 : vector<1x8xf32>
    %cst_21 = arith.constant 9.99999974E-6 : f32
    %51 = vector.broadcast %cst_21 : f32 to vector<1x8xf32>
    %52 = arith.addf %50, %51 : vector<1x8xf32>
    %53 = math.rsqrt %52 : vector<1x8xf32>
    %54 = tpu.concatenate %43, %53 in 0 : vector<1x8xf32>, vector<1x8xf32> -> vector<2x8xf32>
    %c0_22 = arith.constant 0 : index
    %c0_23 = arith.constant 0 : index
    %55 = vector.load %arg10[%c0_22, %c0_23] : memref<8x128xf32, #tpu.memory_space<vmem>>, vector<8x128xf32>
    %cst_24 = arith.constant dense<0.000000e+00> : vector<2x128xf32>
    %56 = tpu.matmul %54, %55, %cst_24 {dimension_numbers = #tpu.dot_dimension_numbers<[1], [0], [0], [1], [0, 0, 1, 1], [], []>} : vector<2x8xf32>, vector<8x128xf32>, vector<2x128xf32> -> vector<2x128xf32>
    %57 = vector.extract_strided_slice %56 {offsets = [0, 0], sizes = [1, 128], strides = [1, 1]} : vector<2x128xf32> to vector<1x128xf32>
    %58 = vector.broadcast %57 : vector<1x128xf32> to vector<8x128xf32>
    %59 = arith.subf %32, %58 : vector<8x128xf32>
    %60 = vector.extract_strided_slice %56 {offsets = [1, 0], sizes = [1, 128], strides = [1, 1]} : vector<2x128xf32> to vector<1x128xf32>
    %61 = vector.broadcast %60 : vector<1x128xf32> to vector<8x128xf32>
    %62 = arith.mulf %59, %61 : vector<8x128xf32>
    %c0_25 = arith.constant 0 : index
    %c0_26 = arith.constant 0 : index
    %63 = vector.load %arg4[%c0_25, %c0_26] : memref<8x128xf32, #tpu.memory_space<vmem>>, vector<8x128xf32>
    %64 = arith.mulf %62, %63 : vector<8x128xf32>
    %c0_27 = arith.constant 0 : index
    %c0_28 = arith.constant 0 : index
    %65 = vector.load %arg5[%c0_27, %c0_28] : memref<8x128xf32, #tpu.memory_space<vmem>>, vector<8x128xf32>
    %66 = arith.addf %64, %65 : vector<8x128xf32>
    %cst_29 = arith.constant 0.000000e+00 : f32
    %67 = vector.broadcast %cst_29 : f32 to vector<8x3xf32>
    %c0_30 = arith.constant 0 : index
    %c0_31 = arith.constant 0 : index
    %68 = vector.load %arg12[%c0_30, %c0_31] : memref<8x134xf32, #tpu.memory_space<vmem>>, vector<8x3xf32>
    tpu.vector_store %arg12[%c0_30, %c0_31], %67 {strides = array<i32>} : memref<8x134xf32, #tpu.memory_space<vmem>>, vector<8x3xf32>,
    %cst_32 = arith.constant 0.000000e+00 : f32
    %69 = vector.broadcast %cst_32 : f32 to vector<8x3xf32>
    %c0_33 = arith.constant 0 : index
    %c131 = arith.constant 131 : index
    %70 = vector.load %arg12[%c0_33, %c131] : memref<8x134xf32, #tpu.memory_space<vmem>>, vector<8x3xf32>
    tpu.vector_store %arg12[%c0_33, %c131], %69 {strides = array<i32>} : memref<8x134xf32, #tpu.memory_space<vmem>>, vector<8x3xf32>,
    %c0_34 = arith.constant 0 : index
    %c3 = arith.constant 3 : index
    %71 = vector.load %arg12[%c0_34, %c3] : memref<8x134xf32, #tpu.memory_space<vmem>>, vector<8x128xf32>
    tpu.vector_store %arg12[%c0_34, %c3], %66 {strides = array<i32>} : memref<8x134xf32, #tpu.memory_space<vmem>>, vector<8x128xf32>,
    %c0_35 = arith.constant 0 : index
    %c0_36 = arith.constant 0 : index
    %72 = vector.load %arg12[%c0_35, %c0_36] : memref<8x134xf32, #tpu.memory_space<vmem>>, vector<8x128xf32>
    %c0_37 = arith.constant 0 : index
    %c0_38 = arith.constant 0 : index
    %73 = vector.load %arg8[%c0_37, %c0_38] : memref<7x128xf32, #tpu.memory_space<vmem>>, vector<1x128xf32>
    %74 = vector.broadcast %73 : vector<1x128xf32> to vector<8x128xf32>
    %75 = arith.mulf %72, %74 : vector<8x128xf32>
    %c0_39 = arith.constant 0 : index
    %c1_40 = arith.constant 1 : index
    %76 = vector.load %arg12[%c0_39, %c1_40] : memref<8x134xf32, #tpu.memory_space<vmem>>, vector<8x128xf32>
    %c1_41 = arith.constant 1 : index
    %c0_42 = arith.constant 0 : index
    %77 = vector.load %arg8[%c1_41, %c0_42] : memref<7x128xf32, #tpu.memory_space<vmem>>, vector<1x128xf32>
    %78 = vector.broadcast %77 : vector<1x128xf32> to vector<8x128xf32>
    %79 = arith.mulf %76, %78 : vector<8x128xf32>
    %c0_43 = arith.constant 0 : index
    %c2_44 = arith.constant 2 : index
    %80 = vector.load %arg12[%c0_43, %c2_44] : memref<8x134xf32, #tpu.memory_space<vmem>>, vector<8x128xf32>
    %c2_45 = arith.constant 2 : index
    %c0_46 = arith.constant 0 : index
    %81 = vector.load %arg8[%c2_45, %c0_46] : memref<7x128xf32, #tpu.memory_space<vmem>>, vector<1x128xf32>
    %82 = vector.broadcast %81 : vector<1x128xf32> to vector<8x128xf32>
    %83 = arith.mulf %80, %82 : vector<8x128xf32>
    %c0_47 = arith.constant 0 : index
    %c3_48 = arith.constant 3 : index
    %84 = vector.load %arg12[%c0_47, %c3_48] : memref<8x134xf32, #tpu.memory_space<vmem>>, vector<8x128xf32>
    %c0_49 = arith.constant 0 : index
    %c4_50 = arith.constant 4 : index
    %85 = vector.load %arg12[%c0_49, %c4_50] : memref<8x134xf32, #tpu.memory_space<vmem>>, vector<8x128xf32>
    %c4_51 = arith.constant 4 : index
    %c0_52 = arith.constant 0 : index
    %86 = vector.load %arg8[%c4_51, %c0_52] : memref<7x128xf32, #tpu.memory_space<vmem>>, vector<1x128xf32>
    %87 = vector.broadcast %86 : vector<1x128xf32> to vector<8x128xf32>
    %88 = arith.mulf %85, %87 : vector<8x128xf32>
    %c0_53 = arith.constant 0 : index
    %c5_54 = arith.constant 5 : index
    %89 = vector.load %arg12[%c0_53, %c5_54] : memref<8x134xf32, #tpu.memory_space<vmem>>, vector<8x128xf32>
    %c5_55 = arith.constant 5 : index
    %c0_56 = arith.constant 0 : index
    %90 = vector.load %arg8[%c5_55, %c0_56] : memref<7x128xf32, #tpu.memory_space<vmem>>, vector<1x128xf32>
    %91 = vector.broadcast %90 : vector<1x128xf32> to vector<8x128xf32>
    %92 = arith.mulf %89, %91 : vector<8x128xf32>
    %c0_57 = arith.constant 0 : index
    %c6_58 = arith.constant 6 : index
    %93 = vector.load %arg12[%c0_57, %c6_58] : memref<8x134xf32, #tpu.memory_space<vmem>>, vector<8x128xf32>
    %c6_59 = arith.constant 6 : index
    %c0_60 = arith.constant 0 : index
    %94 = vector.load %arg8[%c6_59, %c0_60] : memref<7x128xf32, #tpu.memory_space<vmem>>, vector<1x128xf32>
    %95 = vector.broadcast %94 : vector<1x128xf32> to vector<8x128xf32>
    %96 = arith.mulf %93, %95 : vector<8x128xf32>
    %97 = tpu.concatenate %75, %79, %83, %84, %88, %92, %96 in 0 : vector<8x128xf32>, vector<8x128xf32>, vector<8x128xf32>, vector<8x128xf32>, vector<8x128xf32>, vector<8x128xf32>, vector<8x128xf32> -> vector<56x128xf32>
    %c0_61 = arith.constant 0 : index
    %c0_62 = arith.constant 0 : index
    %98 = vector.load %arg6[%c0_61, %c0_62] : memref<8x56xf32, #tpu.memory_space<vmem>>, vector<8x56xf32>
    %cst_63 = arith.constant dense<0.000000e+00> : vector<8x128xf32>
    %99 = tpu.matmul %98, %97, %cst_63 {dimension_numbers = #tpu.dot_dimension_numbers<[1], [0], [0], [1], [0, 0, 1, 1], [], []>} : vector<8x56xf32>, vector<56x128xf32>, vector<8x128xf32> -> vector<8x128xf32>
    %c0_64 = arith.constant 0 : index
    %c0_65 = arith.constant 0 : index
    %100 = vector.load %arg7[%c0_64, %c0_65] : memref<8x1xf32, #tpu.memory_space<vmem>>, vector<8x1xf32>
    %101 = vector.broadcast %100 : vector<8x1xf32> to vector<8x128xf32>
    %102 = arith.addf %99, %101 : vector<8x128xf32>
    %cst_66 = arith.constant 5.000000e-01 : f32
    %103 = vector.broadcast %cst_66 : f32 to vector<8x128xf32>
    %104 = arith.mulf %103, %102 : vector<8x128xf32>
    %cst_67 = arith.constant 0.707106769 : f32
    %105 = vector.broadcast %cst_67 : f32 to vector<8x128xf32>
    %106 = arith.mulf %102, %105 : vector<8x128xf32>
    %107 = math.erf %106 : vector<8x128xf32>
    %cst_68 = arith.constant 1.000000e+00 : f32
    %108 = vector.broadcast %cst_68 : f32 to vector<8x128xf32>
    %109 = arith.addf %108, %107 : vector<8x128xf32>
    %110 = arith.mulf %104, %109 : vector<8x128xf32>
    %c0_69 = arith.constant 0 : index
    %c0_70 = arith.constant 0 : index
    %c0_71 = arith.constant 0 : index
    %111 = vector.load %arg11[%c0_69, %c0_70, %c0_71] : memref<1x8x128xf32, #tpu.memory_space<vmem>>, vector<1x8x128xf32>
    %112 = vector.shape_cast %111 : vector<1x8x128xf32> to vector<8x128xf32>
    %113 = vector.shape_cast %110 : vector<8x128xf32> to vector<1x8x128xf32>
    tpu.vector_store %arg11[%c0_69, %c0_70, %c0_71], %113 {strides = array<i32>} : memref<1x8x128xf32, #tpu.memory_space<vmem>>, vector<1x8x128xf32>,
    return
  }
  func.func @transform_0(%arg0: i32) -> (i32, i32, i32) {
    %c0_i32 = arith.constant 0 : i32
    %c0_i32_0 = arith.constant 0 : i32
    %c0_i32_1 = arith.constant 0 : i32
    return %arg0, %c0_i32, %c0_i32_0 : i32, i32, i32
  }
  func.func @transform_1(%arg0: i32) -> (i32, i32) {
    %c0_i32 = arith.constant 0 : i32
    %c0_i32_0 = arith.constant 0 : i32
    %c0_i32_1 = arith.constant 0 : i32
    return %c0_i32, %c0_i32_0 : i32, i32
  }
  func.func @transform_2(%arg0: i32) -> (i32, i32) {
    %c0_i32 = arith.constant 0 : i32
    %c0_i32_0 = arith.constant 0 : i32
    %c0_i32_1 = arith.constant 0 : i32
    return %c0_i32, %c0_i32_0 : i32, i32
  }
  func.func @transform_3(%arg0: i32) -> (i32, i32) {
    %c0_i32 = arith.constant 0 : i32
    %c0_i32_0 = arith.constant 0 : i32
    %c0_i32_1 = arith.constant 0 : i32
    return %c0_i32, %c0_i32_0 : i32, i32
  }
  func.func @transform_4(%arg0: i32) -> (i32, i32) {
    %c0_i32 = arith.constant 0 : i32
    %c0_i32_0 = arith.constant 0 : i32
    %c0_i32_1 = arith.constant 0 : i32
    return %c0_i32, %c0_i32_0 : i32, i32
  }
  func.func @transform_5(%arg0: i32) -> (i32, i32) {
    %c0_i32 = arith.constant 0 : i32
    %c0_i32_0 = arith.constant 0 : i32
    %c0_i32_1 = arith.constant 0 : i32
    return %c0_i32, %c0_i32_0 : i32, i32
  }
  func.func @transform_6(%arg0: i32) -> (i32, i32) {
    %c0_i32 = arith.constant 0 : i32
    %c0_i32_0 = arith.constant 0 : i32
    %c0_i32_1 = arith.constant 0 : i32
    return %c0_i32, %c0_i32_0 : i32, i32
  }
  func.func @transform_7(%arg0: i32) -> (i32, i32) {
    %c0_i32 = arith.constant 0 : i32
    %c0_i32_0 = arith.constant 0 : i32
    %c0_i32_1 = arith.constant 0 : i32
    return %c0_i32, %c0_i32_0 : i32, i32
  }
  func.func @transform_8(%arg0: i32) -> (i32, i32) {
    %c0_i32 = arith.constant 0 : i32
    %c0_i32_0 = arith.constant 0 : i32
    %c0_i32_1 = arith.constant 0 : i32
    return %c0_i32, %c0_i32_0 : i32, i32
  }
  func.func @transform_9(%arg0: i32) -> (i32, i32) {
    %c0_i32 = arith.constant 0 : i32
    %c0_i32_0 = arith.constant 0 : i32
    %c0_i32_1 = arith.constant 0 : i32
    return %c0_i32, %c0_i32_0 : i32, i32
  }
  func.func @transform_10(%arg0: i32) -> (i32, i32, i32) {
    %c0_i32 = arith.constant 0 : i32
    %c0_i32_0 = arith.constant 0 : i32
    %c0_i32_1 = arith.constant 0 : i32
    return %arg0, %c0_i32, %c0_i32_0 : i32, i32, i32
  }
}

</mosaic_0001>

<llo_original>
// kernel: tpu_custom_call.1
$region0: #{tpu_custom_call.1}
  #allocation0 [shape = 'u32[]', space=smem, size = 0x4, offset = 0x4, fixed_abs, tag = 'smem constant byte address 0x4 - core index']
  #allocation1 [shape = 'u32[72,128]{1,0:T(1,128)}', space=vmem, size = 0x9000, scoped, tag = 'internal scratch']
  #allocation2 [shape = 'f32[8,134]{1,0:T(8,128)}', space=vmem, size = 0x2000, scoped, tag = 'scratch operand']
  %s0 = inlined_call_operand.vmem [shape: f32[1,4,134], index: 0, kind: input, shape index: {}]
  %s1 = inlined_call_operand.vmem [shape: f32[8,28], index: 1, kind: input, shape index: {}]
  %s2 = inlined_call_operand.vmem [shape: f32[8,1], index: 2, kind: input, shape index: {}]
  %s3 = inlined_call_operand.vmem [shape: f32[8,128], index: 3, kind: input, shape index: {}]
  %s4 = inlined_call_operand.vmem [shape: f32[8,128], index: 4, kind: input, shape index: {}]
  %s5 = inlined_call_operand.vmem [shape: f32[8,56], index: 5, kind: input, shape index: {}]
  %s6 = inlined_call_operand.vmem [shape: f32[8,1], index: 6, kind: input, shape index: {}]
  %s7 = inlined_call_operand.vmem [shape: f32[7,128], index: 7, kind: input, shape index: {}]
  %s8 = inlined_call_operand.vmem [shape: f32[128,8], index: 8, kind: input, shape index: {}]
  %s9 = inlined_call_operand.vmem [shape: f32[8,128], index: 9, kind: input, shape index: {}]
  %s10 = inlined_call_operand.hbm [shape: f32[1,8,128], index: 10, kind: output, shape index: {}]
  %s11 = sld [smem:[#allocation0]]
  $region50: #{tpu_custom_call.1} parent=0
    _
  %s13 = ssub.s32 1, %s11
  %s14 = scalar_select 0, %s13, %s11
  $region1: #{tpu_custom_call.1} parent=0
    #allocation3 [shape = 'u8[4096]{0}', space=vmem, size = 0x1000, scoped, tag = 'output window, operand 0, single buffered']
    #allocation4 [shape = 's32[1]{0}', space=sflag, size = 0x4, scoped, tag = 'scoped memory for tpu_custom_call.1']
    %15 = vsyncpa [#allocation4], 0
    // Predicated region
    $region2: #{tpu_custom_call.1} parent=1 // pred_check
      _
    $region3: #{tpu_custom_call.1} parent=1 // pred_check_branch
      %17 = sbr.rel (0) target = $region5
    $region4: #{tpu_custom_call.1} parent=1 // pred_region
      _
    $region5: #{tpu_custom_call.1} parent=1 // pred_fallthru
      _
    // Predicated region
    $region6: #{tpu_custom_call.1} parent=1 // pred_check
      _
    $region7: #{tpu_custom_call.1} parent=1 // pred_check_branch
      %19 = sbr.rel (0) target = $region9
    $region8: #{tpu_custom_call.1} parent=1 // pred_region
      _
    $region9: #{tpu_custom_call.1} parent=1 // pred_fallthru
      _
    // Predicated region
    $region10: #{tpu_custom_call.1} parent=1 // pred_check
      _
    $region11: #{tpu_custom_call.1} parent=1 // pred_check_branch
      %21 = sbr.rel (0) target = $region13
    $region12: #{tpu_custom_call.1} parent=1 // pred_region
      _
    $region13: #{tpu_custom_call.1} parent=1 // pred_fallthru
      _
    // Predicated region
    $region14: #{tpu_custom_call.1} parent=1 // pred_check
      _
    $region15: #{tpu_custom_call.1} parent=1 // pred_check_branch
      %23 = sbr.rel (0) target = $region17
    $region16: #{tpu_custom_call.1} parent=1 // pred_region
      _
    $region17: #{tpu_custom_call.1} parent=1 // pred_fallthru
      _
    // Predicated region
    $region18: #{tpu_custom_call.1} parent=1 // pred_check
      _
    $region19: #{tpu_custom_call.1} parent=1 // pred_check_branch
      %25 = sbr.rel (0) target = $region21
    $region20: #{tpu_custom_call.1} parent=1 // pred_region
      _
    $region21: #{tpu_custom_call.1} parent=1 // pred_fallthru
      _
    // Predicated region
    $region22: #{tpu_custom_call.1} parent=1 // pred_check
      _
    $region23: #{tpu_custom_call.1} parent=1 // pred_check_branch
      %27 = sbr.rel (0) target = $region25
    $region24: #{tpu_custom_call.1} parent=1 // pred_region
      _
    $region25: #{tpu_custom_call.1} parent=1 // pred_fallthru
      _
    // Predicated region
    $region26: #{tpu_custom_call.1} parent=1 // pred_check
      _
    $region27: #{tpu_custom_call.1} parent=1 // pred_check_branch
      %29 = sbr.rel (0) target = $region29
    $region28: #{tpu_custom_call.1} parent=1 // pred_region
      _
    $region29: #{tpu_custom_call.1} parent=1 // pred_fallthru
      _
    // Predicated region
    $region30: #{tpu_custom_call.1} parent=1 // pred_check
      _
    $region31: #{tpu_custom_call.1} parent=1 // pred_check_branch
      %31 = sbr.rel (0) target = $region33
    $region32: #{tpu_custom_call.1} parent=1 // pred_region
      _
    $region33: #{tpu_custom_call.1} parent=1 // pred_fallthru
      _
    // Predicated region
    $region34: #{tpu_custom_call.1} parent=1 // pred_check
      _
    $region35: #{tpu_custom_call.1} parent=1 // pred_check_branch
      %33 = sbr.rel (0) target = $region37
    $region36: #{tpu_custom_call.1} parent=1 // pred_region
      _
    $region37: #{tpu_custom_call.1} parent=1 // pred_fallthru
      _
    // Predicated region
    $region38: #{tpu_custom_call.1} parent=1 // pred_check
      _
    $region39: #{tpu_custom_call.1} parent=1 // pred_check_branch
      %35 = sbr.rel (0) target = $region41
    $region40: #{tpu_custom_call.1} parent=1 // pred_region
      _
    $region41: #{tpu_custom_call.1} parent=1 // pred_fallthru
      _
    %v36 = vld [vmem:[%s0] sm:$0xff]
    %v37 = vld [vmem:[%s7] sm:$0x1]
    %v38 = vperm.slane %v37, 0
    %v39 = vmul.f32 %v36, %v38
    %v40 = vld [vmem:[%s7 + $0x1] sm:$0x1]
    %v41 = vperm.slane %v40, 0
    %43 = vrot.lane.b32.xlu0 %v41, 1
    %v44 = vpop.permute.xlu0 %43
    %v45 = vrot.slane %v44, 4
    %vm46 = vcmask 7168
    %v47 = vsel %vm46, %v45, %v44
    %v49 = vmul.f32 %v36, %v47
    %v50 = vld [vmem:[%s7 + $0x2] sm:$0x1]
    %v51 = vperm.slane %v50, 0
    %53 = vrot.lane.b32.xlu0 %v51, 2
    %v54 = vpop.permute.xlu0 %53
    %v55 = vrot.slane %v54, 4
    %vm56 = vcmask 15360
    %v57 = vsel %vm56, %v55, %v54
    %v59 = vmul.f32 %v36, %v57
    %v60 = vld [vmem:[%s7 + $0x4] sm:$0x1]
    %v61 = vperm.slane %v60, 0
    %63 = vrot.lane.b32.xlu0 %v61, 4
    %v64 = vpop.permute.xlu0 %63
    %v65 = vrot.slane %v64, 4
    %vm66 = vcmask 31744
    %v67 = vsel %vm66, %v65, %v64
    %v69 = vmul.f32 %v36, %v67
    %v70 = vld [vmem:[%s7 + $0x5] sm:$0x1]
    %v71 = vperm.slane %v70, 0
    %73 = vrot.lane.b32.xlu0 %v71, 5
    %v74 = vpop.permute.xlu0 %73
    %v75 = vrot.slane %v74, 4
    %vm76 = vcmask 39936
    %v77 = vsel %vm76, %v75, %v74
    %v79 = vmul.f32 %v36, %v77
    %v80 = vld [vmem:[%s7 + $0x6] sm:$0x1]
    %v81 = vperm.slane %v80, 0
    %83 = vrot.lane.b32.xlu0 %v81, 6
    %v84 = vpop.permute.xlu0 %83
    %v85 = vrot.slane %v84, 4
    %vm86 = vcmask 48128
    %v87 = vsel %vm86, %v85, %v84
    %v89 = vmul.f32 %v36, %v87
    %s91 = scalar_lea.vmem [#allocation1], 1
    %92 = vst [vmem:[%s91] ss:$2 sm:$0xff] %v49
    %v93 = vld.sshfl [vmem:[#allocation1] sm:$0xff pattern:$0x75316420]
    %v94 = vld.sshfl [vmem:[#allocation1 + $0x8] sm:$0xff pattern:$0x75316420]
    %95 = vrot.lane.b32.xlu0 %v93, 127
    %v96 = vpop.permute.xlu0 %95
    %97 = vrot.lane.b32.xlu0 %v94, 127
    %v98 = vpop.permute.xlu0 %97
    %vm99 = vcmask 1039360
    %v100 = vsel %vm99, %v96, %v98
    %103 = vst [vmem:[#allocation1] ss:$2 sm:$0xff] %v59
    %v104 = vld.sshfl [vmem:[#allocation1] sm:$0xff pattern:$0x75316420]
    %v105 = vld.sshfl [vmem:[#allocation1 + $0x8] sm:$0xff pattern:$0x75316420]
    %106 = vrot.lane.b32.xlu0 %v104, 126
    %v107 = vpop.permute.xlu0 %106
    %108 = vrot.lane.b32.xlu0 %v105, 126
    %v109 = vpop.permute.xlu0 %108
    %vm110 = vcmask 1031168
    %v111 = vsel %vm110, %v107, %v109
    %s114 = scalar_lea.vmem [#allocation1], 1
    %115 = vst [vmem:[%s114] ss:$2 sm:$0xff] %v36
    %v116 = vld.sshfl [vmem:[#allocation1] sm:$0xff pattern:$0x75316420]
    %v117 = vld.sshfl [vmem:[#allocation1 + $0x8] sm:$0xff pattern:$0x75316420]
    %118 = vrot.lane.b32.xlu0 %v116, 125
    %v119 = vpop.permute.xlu0 %118
    %120 = vrot.lane.b32.xlu0 %v117, 125
    %v121 = vpop.permute.xlu0 %120
    %vm122 = vcmask 1022976
    %v123 = vsel %vm122, %v119, %v121
    %126 = vst [vmem:[#allocation1] ss:$2 sm:$0xff] %v69
    %v127 = vld.sshfl [vmem:[#allocation1] sm:$0xff pattern:$0x75316420]
    %v128 = vld.sshfl [vmem:[#allocation1 + $0x8] sm:$0xff pattern:$0x75316420]
    %129 = vrot.lane.b32.xlu0 %v127, 124
    %v130 = vpop.permute.xlu0 %129
    %131 = vrot.lane.b32.xlu0 %v128, 124
    %v132 = vpop.permute.xlu0 %131
    %vm133 = vcmask 1014784
    %v134 = vsel %vm133, %v130, %v132
    %s137 = scalar_lea.vmem [#allocation1], 1
    %138 = vst [vmem:[%s137] ss:$2 sm:$0xff] %v79
    %v139 = vld.sshfl [vmem:[#allocation1] sm:$0xff pattern:$0x75316420]
    %v140 = vld.sshfl [vmem:[#allocation1 + $0x8] sm:$0xff pattern:$0x75316420]
    %141 = vrot.lane.b32.xlu0 %v139, 123
    %v142 = vpop.permute.xlu0 %141
    %143 = vrot.lane.b32.xlu0 %v140, 123
    %v144 = vpop.permute.xlu0 %143
    %vm145 = vcmask 1006592
    %v146 = vsel %vm145, %v142, %v144
    %149 = vst [vmem:[#allocation1] ss:$2 sm:$0xff] %v89
    %v150 = vld.sshfl [vmem:[#allocation1] sm:$0xff pattern:$0x75316420]
    %v151 = vld.sshfl [vmem:[#allocation1 + $0x8] sm:$0xff pattern:$0x75316420]
    %152 = vrot.lane.b32.xlu0 %v150, 122
    %v153 = vpop.permute.xlu0 %152
    %154 = vrot.lane.b32.xlu0 %v151, 122
    %v155 = vpop.permute.xlu0 %154
    %vm156 = vcmask 998400
    %v157 = vsel %vm156, %v153, %v155
    %vm158 = vcmask 1043456
    %v159 = vsel %vm158, %v39, %v100
    %v160 = vsel %vm158, %v111, %v123
    %v161 = vsel %vm158, %v134, %v146
    %v162 = vld [vmem:[%s1] sm:$0xff]
    %v163 = vld [vmem:[%s2] sm:$0xff]
    %165 = vset.pattern.permute.xlu0 0
    %166 = vperm.xlu0 %165, %v163
    %v167 = vpop.permute.xlu0 %166
    %vm169 = vcmask 228352
    %v171 = vsel %vm169, %v162, 0
    %v173 = vsel %vm158, %v157, 0
    %175 = vmatpush.msra.mxu0 0.0
    %176 = vmatpush.msra.mxu0 0.0
    %177 = vmatpush.msra.mxu0 0.0
    %178 = vmatpush.msra.mxu0 0.0
    %179 = vmatpush.msra.mxu0 0.0
    %180 = vmatpush.msra.mxu0 0.0
    %181 = vmatpush.msra.mxu0 0.0
    %182 = vmatpush.msra.mxu0 0.0
    %183 = vmatpush.msra.mxu0 0.0
    %184 = vmatpush.msra.mxu0 0.0
    %185 = vmatpush.msra.mxu0 0.0
    %186 = vmatpush.msra.mxu0 0.0
    %187 = vmatpush.msra.mxu0 %v173
    %188 = vmatpush.msra.mxu0 %v161
    %189 = vmatpush.msra.mxu0 %v160
    %190 = vmatpush.msra.mxu0 %v159
    %191 = vmatmul.f32.gmra.mxu0 %v171
    %v192 = vpop.f32.mrf.mxu0
    %v193 = vadd.f32 %v167, %v192
    %194 = vdwg.mxu0
    %v195 = vrot.slane %v193, 4
    %v196 = vadd.f32 %v193, %v195
    %v197 = vrot.slane %v196, 2
    %v198 = vadd.f32 %v196, %v197
    %v199 = vrot.slane %v198, 1
    %v200 = vadd.f32 %v198, %v199
    %v201 = vmul.f32 %v193, %v193
    %v202 = vrot.slane %v201, 4
    %v203 = vadd.f32 %v201, %v202
    %v204 = vrot.slane %v203, 2
    %v205 = vadd.f32 %v203, %v204
    %v206 = vrot.slane %v205, 1
    %v207 = vadd.f32 %v205, %v206
    %vm208 = vcmask 1040384
    %v209 = vsel %vm208, %v200, %v207
    %v210 = vld [vmem:[%s8] sm:$0xff]
    %v211 = vld [vmem:[%s8 + $0x8] sm:$0xff]
    %v212 = vld [vmem:[%s8 + $0x10] sm:$0xff]
    %v213 = vld [vmem:[%s8 + $0x18] sm:$0xff]
    %v214 = vld [vmem:[%s8 + $0x20] sm:$0xff]
    %v215 = vld [vmem:[%s8 + $0x28] sm:$0xff]
    %v216 = vld [vmem:[%s8 + $0x30] sm:$0xff]
    %v217 = vld [vmem:[%s8 + $0x38] sm:$0xff]
    %v218 = vld [vmem:[%s8 + $0x40] sm:$0xff]
    %v219 = vld [vmem:[%s8 + $0x48] sm:$0xff]
    %v220 = vld [vmem:[%s8 + $0x50] sm:$0xff]
    %v221 = vld [vmem:[%s8 + $0x58] sm:$0xff]
    %v222 = vld [vmem:[%s8 + $0x60] sm:$0xff]
    %v223 = vld [vmem:[%s8 + $0x68] sm:$0xff]
    %v224 = vld [vmem:[%s8 + $0x70] sm:$0xff]
    %v225 = vld [vmem:[%s8 + $0x78] sm:$0xff]
    %226 = vmatpush.msra.mxu0 %v225
    %227 = vmatpush.msra.mxu0 %v224
    %228 = vmatpush.msra.mxu0 %v223
    %229 = vmatpush.msra.mxu0 %v222
    %230 = vmatpush.msra.mxu0 %v221
    %231 = vmatpush.msra.mxu0 %v220
    %232 = vmatpush.msra.mxu0 %v219
    %233 = vmatpush.msra.mxu0 %v218
    %234 = vmatpush.msra.mxu0 %v217
    %235 = vmatpush.msra.mxu0 %v216
    %236 = vmatpush.msra.mxu0 %v215
    %237 = vmatpush.msra.mxu0 %v214
    %238 = vmatpush.msra.mxu0 %v213
    %239 = vmatpush.msra.mxu0 %v212
    %240 = vmatpush.msra.mxu0 %v211
    %241 = vmatpush.msra.mxu0 %v210
    %242 = vmatmul.f32.gmra.mxu0 %v209
    %v243 = vpop.f32.mrf.mxu0
    %v244 = vadd.f32 0.0, %v243
    %245 = vdwg.mxu0
    %v246 = vmul.f32 %v244, 0.0078125
    %v247 = vmul.f32 %v246, %v246
    %v249 = vrot.slane %v247, 7
    %v251 = vsub.f32 %v246, %v249
    %v252 = vmax.f32 %v251, 0.0
    %v253 = vadd.f32 %v252, 1e-05
    %v254 = vrsqrt.pop %v253
    %v255 = vmul.f32 %v254, %v253
    %v256 = vmul.f32 %v255, %v254
    %v257 = vmul.f32 0.5, %v256
    %v258 = vsub.f32 1.5, %v257
    %v259 = vmul.f32 %v254, %v258
    %vm260 = vweird.f32 %v253
    %vm261 = vweird.f32 %v254
    %vm262 = vmor %vm260, %vm261
    %v263 = vsel %vm262, %v254, %v259
    %v264 = vsel %vm208, %v246, %v263
    %v265 = vld [vmem:[%s9] sm:$0xff]
    %vm266 = vcmask 64512
    %v268 = vsel %vm266, %v264, 0
    %270 = vmatpush.msra.mxu0 0.0
    %271 = vmatpush.msra.mxu0 0.0
    %272 = vmatpush.msra.mxu0 0.0
    %273 = vmatpush.msra.mxu0 0.0
    %274 = vmatpush.msra.mxu0 0.0
    %275 = vmatpush.msra.mxu0 0.0
    %276 = vmatpush.msra.mxu0 0.0
    %277 = vmatpush.msra.mxu0 0.0
    %278 = vmatpush.msra.mxu0 0.0
    %279 = vmatpush.msra.mxu0 0.0
    %280 = vmatpush.msra.mxu0 0.0
    %281 = vmatpush.msra.mxu0 0.0
    %282 = vmatpush.msra.mxu0 0.0
    %283 = vmatpush.msra.mxu0 0.0
    %284 = vmatpush.msra.mxu0 0.0
    %285 = vmatpush.msra.mxu0 %v265
    %286 = vmatmul.f32.gmra.mxu0 %v268
    %v287 = vpop.f32.mrf.mxu0
    %v288 = vadd.f32 0.0, %v287
    %289 = vdwg.mxu0
    %v290 = vperm.slane %v288, 0
    %v291 = vsub.f32 %v193, %v290
    %v292 = vperm.slane %v288, 1
    %v293 = vmul.f32 %v291, %v292
    %v294 = vld [vmem:[%s3] sm:$0xff]
    %v295 = vmul.f32 %v293, %v294
    %v296 = vld [vmem:[%s4] sm:$0xff]
    %v297 = vadd.f32 %v295, %v296
    %vm298 = vcmask 23552
    %299 = vst.msk [vmem:[#allocation2] sm:$0xff] %vm298, 0.0
    %vm300 = vcmask 48152
    %301 = vst.msk [vmem:[#allocation2 + $0x8] sm:$0xff] %vm300, 0.0
    %303 = vrot.lane.b32.xlu0 %v297, 3
    %v304 = vpop.permute.xlu0 %303
    %vm306 = vcmask 1047576
    %307 = vst.msk [vmem:[#allocation2] sm:$0xff] %vm306, %v304
    %308 = vst.msk [vmem:[#allocation2 + $0x8] sm:$0xff] %vm298, %v304
    %v309 = vld [vmem:[#allocation2] sm:$0xff]
    %v310 = vld [vmem:[%s7] sm:$0x1]
    %v311 = vperm.slane %v310, 0
    %v312 = vmul.f32 %v309, %v311
    %v313 = vld [vmem:[#allocation2 + $0x8] sm:$0xff]
    %v314 = vld [vmem:[%s7 + $0x1] sm:$0x1]
    %v315 = vperm.slane %v314, 0
    %317 = vrot.lane.b32.xlu0 %v315, 1
    %v318 = vpop.permute.xlu0 %317
    %v320 = vmul.f32 %v309, %v318
    %v321 = vmul.f32 %v313, %v318
    %v322 = vld [vmem:[%s7 + $0x2] sm:$0x1]
    %v323 = vperm.slane %v322, 0
    %325 = vrot.lane.b32.xlu0 %v323, 2
    %v326 = vpop.permute.xlu0 %325
    %v328 = vmul.f32 %v309, %v326
    %v329 = vmul.f32 %v313, %v326
    %v330 = vld [vmem:[%s7 + $0x4] sm:$0x1]
    %v331 = vperm.slane %v330, 0
    %333 = vrot.lane.b32.xlu0 %v331, 4
    %v334 = vpop.permute.xlu0 %333
    %v336 = vmul.f32 %v309, %v334
    %v337 = vmul.f32 %v313, %v334
    %v338 = vld [vmem:[%s7 + $0x5] sm:$0x1]
    %v339 = vperm.slane %v338, 0
    %341 = vrot.lane.b32.xlu0 %v339, 5
    %v342 = vpop.permute.xlu0 %341
    %v344 = vmul.f32 %v309, %v342
    %v345 = vmul.f32 %v313, %v342
    %v346 = vld [vmem:[%s7 + $0x6] sm:$0x1]
    %v347 = vperm.slane %v346, 0
    %349 = vrot.lane.b32.xlu0 %v347, 6
    %v350 = vpop.permute.xlu0 %349
    %v352 = vmul.f32 %v309, %v350
    %v353 = vmul.f32 %v313, %v350
    %356 = vrot.lane.b32.xlu0 %v320, 127
    %v357 = vpop.permute.xlu0 %356
    %358 = vrot.lane.b32.xlu0 %v321, 127
    %v359 = vpop.permute.xlu0 %358
    %v360 = vsel %vm99, %v357, %v359
    %364 = vrot.lane.b32.xlu0 %v328, 126
    %v365 = vpop.permute.xlu0 %364
    %366 = vrot.lane.b32.xlu0 %v329, 126
    %v367 = vpop.permute.xlu0 %366
    %v368 = vsel %vm110, %v365, %v367
    %372 = vrot.lane.b32.xlu0 %v309, 125
    %v373 = vpop.permute.xlu0 %372
    %374 = vrot.lane.b32.xlu0 %v313, 125
    %v375 = vpop.permute.xlu0 %374
    %v376 = vsel %vm122, %v373, %v375
    %380 = vrot.lane.b32.xlu0 %v336, 124
    %v381 = vpop.permute.xlu0 %380
    %382 = vrot.lane.b32.xlu0 %v337, 124
    %v383 = vpop.permute.xlu0 %382
    %v384 = vsel %vm133, %v381, %v383
    %388 = vrot.lane.b32.xlu0 %v344, 123
    %v389 = vpop.permute.xlu0 %388
    %390 = vrot.lane.b32.xlu0 %v345, 123
    %v391 = vpop.permute.xlu0 %390
    %v392 = vsel %vm145, %v389, %v391
    %396 = vrot.lane.b32.xlu0 %v352, 122
    %v397 = vpop.permute.xlu0 %396
    %398 = vrot.lane.b32.xlu0 %v353, 122
    %v399 = vpop.permute.xlu0 %398
    %v400 = vsel %vm156, %v397, %v399
    %v402 = vld [vmem:[%s5] sm:$0xff]
    %v403 = vld [vmem:[%s6] sm:$0xff]
    %405 = vset.pattern.permute.xlu0 0
    %406 = vperm.xlu0 %405, %v403
    %v407 = vpop.permute.xlu0 %406
    %vm409 = vcmask 457728
    %v411 = vsel %vm409, %v402, 0
    %413 = vmatpush.msra.mxu0 0.0
    %414 = vmatpush.msra.mxu0 0.0
    %415 = vmatpush.msra.mxu0 0.0
    %416 = vmatpush.msra.mxu0 0.0
    %417 = vmatpush.msra.mxu0 0.0
    %418 = vmatpush.msra.mxu0 0.0
    %419 = vmatpush.msra.mxu0 0.0
    %420 = vmatpush.msra.mxu0 0.0
    %421 = vmatpush.msra.mxu0 0.0
    %422 = vmatpush.msra.mxu0 %v400
    %423 = vmatpush.msra.mxu0 %v392
    %424 = vmatpush.msra.mxu0 %v384
    %425 = vmatpush.msra.mxu0 %v376
    %426 = vmatpush.msra.mxu0 %v368
    %427 = vmatpush.msra.mxu0 %v360
    %428 = vmatpush.msra.mxu0 %v312
    %429 = vmatmul.f32.gmra.mxu0 %v411
    %v430 = vpop.f32.mrf.mxu0
    %v431 = vadd.f32 %v407, %v430
    %432 = vdwg.mxu0
    %v433 = vmul.f32 %v431, 0.5
    %v434 = vmul.f32 %v431, 0.70710677
    %v435 = vmul.f32 %v434, %v434
    %v436 = vmin.f32 16.0, %v435
    %v437 = vmul.f32 %v436, 2.1237322e-06
    %v438 = vadd.f32 %v437, 0.00028619796
    %v439 = vmul.f32 %v436, %v438
    %v440 = vadd.f32 %v439, 0.0036580483
    %v441 = vmul.f32 %v436, %v440
    %v442 = vadd.f32 %v441, 0.05243302
    %v443 = vmul.f32 %v436, %v442
    %v444 = vadd.f32 %v443, 0.18741608
    %v445 = vmul.f32 %v436, %v444
    %v446 = vadd.f32 %v445, 1.1283791
    %v447 = vmul.f32 %v434, %v446
    %v448 = vmul.f32 %v436, 3.8918573e-05
    %v449 = vadd.f32 %v448, 0.001143296
    %v450 = vmul.f32 %v436, %v449
    %v451 = vadd.f32 %v450, 0.014752088
    %v452 = vmul.f32 %v436, %v451
    %v453 = vadd.f32 %v452, 0.112945676
    %v454 = vmul.f32 %v436, %v453
    %v455 = vadd.f32 %v454, 0.4994258
    %v456 = vmul.f32 %v436, %v455
    %v457 = vadd.f32 %v456, 1.0
    %v458 = vrcp.pop %v457
    %v459 = vmul.f32 %v457, %v458
    %v460 = vsub.f32 1.0, %v459
    %v461 = vmul.f32 %v458, %v460
    %v462 = vadd.f32 %v458, %v461
    %vm463 = vweird.f32 %v457
    %vm464 = vweird.f32 %v458
    %vm465 = vmor %vm463, %vm464
    %v466 = vsel %vm465, %v458, %v462
    %v467 = vand.u32 2147483647, %v457
    %vm468 = vcmp.eq.f32.partialorder %v467, 8.507059e+37
    %v469 = vand.u32 %v457, 2147483648
    %v470 = vor.u32 1.1754944e-38, %v469
    %v471 = vsel %vm468, %v470, %v466
    %v472 = vmul.f32 %v447, %v471
    %v473 = vmin.f32 %v472, 1.0
    %v474 = vmax.f32 %v473, -1.0
    %v475 = vadd.f32 %v474, 1.0
    %v476 = vmul.f32 %v433, %v475
    %477 = vst [vmem:[#allocation3] sm:$0xff] %v476
    // Predicated region
    $region42: #{tpu_custom_call.1} parent=1 // pred_check
      _
    $region43: #{tpu_custom_call.1} parent=1 // pred_check_branch
      %479 = sbr.rel (0) target = $region45
    $region44: #{tpu_custom_call.1} parent=1 // pred_region
      %481 = vsyncadd [#allocation4], 0
      %s483 = sshll.u32 [#allocation3], 4
      %s484 = int_to_ptr.vmem [resolvable:$true] %s483
      %s485 = sshll.u32 %s10, 4
      %s486 = int_to_ptr.hbm [resolvable:$true] %s485
      %488 = dma.vmem_to_hbm [thread:$0]  %s484, 128, %s486, [#allocation4]
    $region45: #{tpu_custom_call.1} parent=1 // pred_fallthru
      _
    // Predicated region
    $region46: #{tpu_custom_call.1} parent=1 // pred_check
      _
    $region47: #{tpu_custom_call.1} parent=1 // pred_check_branch
      %490 = sbr.rel (0) target = $region49
    $region48: #{tpu_custom_call.1} parent=1 // pred_region
      %492 = dma.done [#allocation4], 128
    $region49: #{tpu_custom_call.1} parent=1 // pred_fallthru
      _
    %493 = vsyncpa [#allocation4], 1

</llo_original>
